<compile_context>
chip_gen: v5e
topology: v5e:2x2
jax: 0.10.0
libtpu: 0.0.40
codegen_flags: <defaults>
</compile_context>

<pallas_src>
import functools
import math

import jax
import jax.numpy as jnp
from jax.experimental import pallas as pl
from jax.experimental.pallas import tpu as pltpu

# ---------------------------------------------------------------------------
# Constants describing the 15 sub-samplers of SampleNet_compose
# ---------------------------------------------------------------------------
_NCATS = [6, 5, 5, 5, 2, 2, 2, 4, 4, 4, 4, 4, 7, 4, 4]  # scale .. simulow
_T = len(_NCATS)          # 15 transforms
_TPAD = 16                # transforms padded to a sublane multiple of 8
_CEFF = 7                 # max(ncat): the only categories that can exist
_CPAD = 8                 # lane-side padding of the tiny logits input
_NEG = -1e30              # mask value for nonexistent categories


def _init_probs_for(origininit):
    """Per-transform 'apply' probability as hard-coded in __init__."""
    if origininit <= 2:
        return [0.2, 0.1, 0.1, 0.1, 0.5, 0.5, 0.5, 0.3, 0.1, 0.05, 0.15,
                0.15, 0.2, 0.1, 0.1]
    if origininit == 3:
        return [0.2, 0.2, 0.2, 0.2, 0.5, 0.05, 0.05, 0.05, 0.05, 0.15, 0.05,
                0.05, 0.05, 0.05, 0.05]
    if origininit == 4:
        return [0.1] * _T
    return [0.05] * _T                     # origininit == 5


def _round_up(x, m):
    return ((x + m - 1) // m) * m


def _block_and_pad(S):
    """Lane block size and padded sample count (grid >= 2 whenever S > 128)."""
    if S <= 128:
        s_blk = 128
    else:
        s_blk = min(1024, _round_up((S + 1) // 2, 128))
    return s_blk, _round_up(S, s_blk)


def _tree16(x, op):
    """Reduce the 16-row sublane axis with a halving tree (pure VPU work)."""
    x = op(x[0:8, :], x[8:16, :])
    x = op(x[0:4, :], x[4:8, :])
    x = op(x[0:2, :], x[2:4, :])
    return op(x[0:1, :], x[1:2, :])


# ---------------------------------------------------------------------------
# Kernel A: indsel is None  (argmax of gumbel-perturbed softmax)
#   p[argmax] == 1 / denom  and  prod_t (1/denom_t) == 1 / prod_t denom_t,
#   so the epilogue is a sublane product tree + one (1, S) divide.
# ---------------------------------------------------------------------------
def _sample_kernel(logits_ref, noise_ref, out_ref, ind_ref, *, inv_t):
    lg = logits_ref[...]                               # (16, 8) scaled logits
    s_blk = out_ref.shape[1]
    ck = 128                                           # 128-lane sub-chunks
    for j in range(s_blk // ck):
        lo = j * ck
        zs = []
        for c in range(_CEFF):
            g = noise_ref[c, :, lo:lo + ck]            # (16, 128) gumbel
            if inv_t != 1.0:
                g = g * jnp.float32(inv_t)
            zs.append(lg[:, c:c + 1] + g)              # logits already / T
        # argmax + running max (first max wins): pure VPU max/select
        m = zs[0]
        arg = jnp.zeros_like(m)
        for c in range(1, _CEFF):
            arg = jnp.where(zs[c] > m, jnp.float32(c), arg)
            m = jnp.maximum(m, zs[c])
        # two-pass softmax denominator: 7 exps / transform / sample
        denom = jnp.exp(zs[0] - m)
        for c in range(1, _CEFF):
            denom = denom + jnp.exp(zs[c] - m)
        ind_ref[:, lo:lo + ck] = arg
        out_ref[:, lo:lo + ck] = 1.0 / _tree16(denom, jnp.multiply)


# ---------------------------------------------------------------------------
# Kernel B: indsel provided (p[indsel]; gumbel noise still applied, matching
# the previous kernel's semantics).  prod_t p_t[idx_t] ==
#   exp(sum_t (z_sel_t - m_t)) / prod_t denom_t  -> one (1,S) exp + divide.
# ---------------------------------------------------------------------------
def _given_kernel(logits_ref, noise_ref, idx_ref, out_ref, *, inv_t):
    lg = logits_ref[...]
    s_blk = out_ref.shape[1]
    ck = 128
    for j in range(s_blk // ck):
        lo = j * ck
        idx = idx_ref[:, lo:lo + ck]                   # (16, 128) int32
        zs = []
        for c in range(_CEFF):
            g = noise_ref[c, :, lo:lo + ck]
            if inv_t != 1.0:
                g = g * jnp.float32(inv_t)
            zs.append(lg[:, c:c + 1] + g)
        m = zs[0]
        zsel = jnp.where(idx == 0, zs[0], jnp.float32(0.0))
        for c in range(1, _CEFF):
            zsel = zsel + jnp.where(idx == c, zs[c], jnp.float32(0.0))
            m = jnp.maximum(m, zs[c])
        denom = jnp.exp(zs[0] - m)
        for c in range(1, _CEFF):
            denom = denom + jnp.exp(zs[c] - m)
        num = jnp.exp(_tree16(zsel - m, jnp.add))      # (1, 128)
        out_ref[:, lo:lo + ck] = num / _tree16(denom, jnp.multiply)


# ---------------------------------------------------------------------------
# Module wrapper
# ---------------------------------------------------------------------------
class SampleNetComposePallas:
    def __init__(self, origininit, temperature):
        self.temperature = float(temperature)
        self.inv_t = 1.0 / self.temperature
        probs = _init_probs_for(origininit)
        # Deterministic logits: cat 0 = "no augmentation" (prob 1-p), rest
        # split evenly; nonexistent categories masked with -1e30; pre-scaled
        # by 1/temperature so the kernel only adds noise.
        rows = []
        for ncat, p in zip(_NCATS, probs):
            row = [math.log(1.0 - p) * self.inv_t]
            row += [math.log(p / (ncat - 1)) * self.inv_t] * (ncat - 1)
            row += [_NEG] * (_CPAD - ncat)
            rows.append(row)
        rows.append([0.0] + [_NEG] * (_CPAD - 1))      # padded 16th transform
        self.logits = jnp.asarray(rows, jnp.float32)   # (16, 8)

    def _run(self, S, indsel_arr, key):
        s_blk, s_pad = _block_and_pad(S)
        grid = (s_pad // s_blk,)
        # Host-side Gumbel noise (pltpu.prng_* has no CPU/interpret lowering).
        noise = jax.random.gumbel(key, (_CEFF, _TPAD, s_pad), dtype=jnp.float32)

        logits_spec = pl.BlockSpec((_TPAD, _CPAD), lambda i: (0, 0))
        noise_spec = pl.BlockSpec((_CEFF, _TPAD, s_blk), lambda i: (0, 0, i))
        out_spec = pl.BlockSpec((1, s_blk), lambda i: (0, i))
        row_spec = pl.BlockSpec((_TPAD, s_blk), lambda i: (0, i))
        cp = pltpu.CompilerParams(dimension_semantics=("parallel",))

        if indsel_arr is None:
            kern = functools.partial(_sample_kernel, inv_t=self.inv_t)
            gs = pltpu.PrefetchScalarGridSpec(
                num_scalar_prefetch=0, grid=grid,
                in_specs=[logits_spec, noise_spec],
                out_specs=(out_spec, row_spec))
            out, ind = pl.pallas_call(
                kern,
                out_shape=(jax.ShapeDtypeStruct((1, s_pad), jnp.float32),
                           jax.ShapeDtypeStruct((_TPAD, s_pad), jnp.float32)),
                grid_spec=gs, compiler_params=cp)(self.logits, noise)
            return out[0, :S], ind[:_T, :S]

        idx = jnp.pad(indsel_arr, ((0, _TPAD - _T), (0, s_pad - S)))
        kern = functools.partial(_given_kernel, inv_t=self.inv_t)
        gs = pltpu.PrefetchScalarGridSpec(
            num_scalar_prefetch=0, grid=grid,
            in_specs=[logits_spec, noise_spec, row_spec],
            out_specs=out_spec)
        out = pl.pallas_call(
            kern, out_shape=jax.ShapeDtypeStruct((1, s_pad), jnp.float32),
            grid_spec=gs, compiler_params=cp)(self.logits, noise, idx)
        # ind is just the supplied indices: no need to route it through HBM.
        return out[0, :S], indsel_arr.astype(jnp.float32)

    def __call__(self, samplenum, indsel, key):
        S = int(samplenum)
        if indsel is None:
            return self._run(S, None, key)
        indsel_arr = jnp.asarray(indsel, jnp.int32).reshape(_T, S)
        return self._run(S, indsel_arr, key)


# ---------------------------------------------------------------------------
# Pure-JAX reference for verification
# ---------------------------------------------------------------------------
def _reference(logits_scaled, noise, inv_t, S, indsel=None):
    z = jnp.transpose(logits_scaled[:, :_CEFF])[:, :, None] + noise * inv_t
    z = z[:, :_T, :S]                                   # (7, 15, S)
    m = jnp.max(z, axis=0, keepdims=True)
    e = jnp.exp(z - m)
    p = e / jnp.sum(e, axis=0, keepdims=True)
    if indsel is None:
        idx = jnp.argmax(z, axis=0)
        sel = jnp.max(p, axis=0)
    else:
        idx = indsel
        sel = jnp.take_along_axis(p, indsel[None, :, :], axis=0)[0]
    return jnp.prod(sel, axis=0), idx


# ---------------------------------------------------------------------------
# Smoke test
# ---------------------------------------------------------------------------
if __name__ == "__main__":
    samplenum = 8
    model = SampleNetComposePallas(origininit=2, temperature=1.0)
    key = jax.random.PRNGKey(0)
    k1, k2 = jax.random.split(key)
    _, s_pad = _block_and_pad(samplenum)

    # Path 1: indsel is None (gumbel-softmax argmax selection)
    out1, ind1 = model(samplenum, None, k1)
    out1 = jax.block_until_ready(out1)
    ind1 = jax.block_until_ready(ind1)
    noise1 = jax.random.gumbel(k1, (_CEFF, _TPAD, s_pad), dtype=jnp.float32)
    ref_out1, ref_idx1 = _reference(model.logits, noise1, model.inv_t,
                                    samplenum, None)
    assert out1.shape == (samplenum,)
    assert ind1.shape == (_T, samplenum)
    assert bool(jnp.allclose(out1, ref_out1, rtol=1e-3, atol=1e-12))
    assert bool(jnp.all(ind1 == ref_idx1.astype(jnp.float32)))
    ncat_col = jnp.asarray(_NCATS, jnp.float32)[:, None]
    assert bool(jnp.all((ind1 >= 0) & (ind1 < ncat_col)))
    assert bool(jnp.all(jnp.isfinite(out1)))
    assert bool(jnp.all((out1 > 0) & (out1 <= 1.0 + 1e-3)))

    # Path 2: indsel provided (15, samplenum)
    indsel = jnp.stack(
        [jnp.arange(samplenum, dtype=jnp.int32) % c for c in _NCATS])
    out2, ind2 = model(samplenum, indsel, k2)
    out2 = jax.block_until_ready(out2)
    ind2 = jax.block_until_ready(ind2)
    noise2 = jax.random.gumbel(k2, (_CEFF, _TPAD, s_pad), dtype=jnp.float32)
    ref_out2, _ = _reference(model.logits, noise2, model.inv_t,
                             samplenum, indsel)
    assert bool(jnp.allclose(out2, ref_out2, rtol=1e-3, atol=1e-12))
    assert bool(jnp.all(ind2 == indsel.astype(jnp.float32)))
    assert bool(jnp.all(jnp.isfinite(out2)))
    assert bool(jnp.all((out2 >= 0) & (out2 <= 1.0 + 1e-3)))

    print("KERNEL_OK")
</pallas_src>

<mosaic_0001>
module attributes {stable_mosaic.version = 11 : i64} {
  func.func @_sample_kernel(%arg0: i32, %arg1: memref<16x8xf32, #tpu.memory_space<vmem>>, %arg2: memref<7x16x128xf32, #tpu.memory_space<vmem>>, %arg3: memref<1x128xf32, #tpu.memory_space<vmem>>, %arg4: memref<16x128xf32, #tpu.memory_space<vmem>>) attributes {dimension_semantics = [#tpu.dimension_semantics<parallel>], iteration_bounds = array<i64: 1>, scalar_prefetch = 0 : i64, scratch_operands = 0 : i64, tpu.core_type = #tpu.core_type<tc>, window_params = [{pipeline_mode = #tpu.pipeline_mode<synchronous>, transform_indices = @transform_0, window_bounds = array<i64: 16, 8>}, {transform_indices = @transform_1, window_bounds = array<i64: 7, 16, 128>}, {transform_indices = @transform_2, window_bounds = array<i64: 1, 128>}, {transform_indices = @transform_3, window_bounds = array<i64: 16, 128>}]} {
    %c0 = arith.constant 0 : index
    %c0_0 = arith.constant 0 : index
    %0 = vector.load %arg1[%c0, %c0_0] : memref<16x8xf32, #tpu.memory_space<vmem>>, vector<16x8xf32>
    %c0_1 = arith.constant 0 : index
    %c0_2 = arith.constant 0 : index
    %c0_3 = arith.constant 0 : index
    %1 = vector.load %arg2[%c0_1, %c0_2, %c0_3] : memref<7x16x128xf32, #tpu.memory_space<vmem>>, vector<1x16x128xf32>
    %2 = vector.shape_cast %1 : vector<1x16x128xf32> to vector<16x128xf32>
    %3 = vector.extract_strided_slice %0 {offsets = [0, 0], sizes = [16, 1], strides = [1, 1]} : vector<16x8xf32> to vector<16x1xf32>
    %4 = vector.broadcast %3 : vector<16x1xf32> to vector<16x128xf32>
    %5 = arith.addf %4, %2 : vector<16x128xf32>
    %c1 = arith.constant 1 : index
    %c0_4 = arith.constant 0 : index
    %c0_5 = arith.constant 0 : index
    %6 = vector.load %arg2[%c1, %c0_4, %c0_5] : memref<7x16x128xf32, #tpu.memory_space<vmem>>, vector<1x16x128xf32>
    %7 = vector.shape_cast %6 : vector<1x16x128xf32> to vector<16x128xf32>
    %8 = vector.extract_strided_slice %0 {offsets = [0, 1], sizes = [16, 1], strides = [1, 1]} : vector<16x8xf32> to vector<16x1xf32>
    %9 = vector.broadcast %8 : vector<16x1xf32> to vector<16x128xf32>
    %10 = arith.addf %9, %7 : vector<16x128xf32>
    %c2 = arith.constant 2 : index
    %c0_6 = arith.constant 0 : index
    %c0_7 = arith.constant 0 : index
    %11 = vector.load %arg2[%c2, %c0_6, %c0_7] : memref<7x16x128xf32, #tpu.memory_space<vmem>>, vector<1x16x128xf32>
    %12 = vector.shape_cast %11 : vector<1x16x128xf32> to vector<16x128xf32>
    %13 = vector.extract_strided_slice %0 {offsets = [0, 2], sizes = [16, 1], strides = [1, 1]} : vector<16x8xf32> to vector<16x1xf32>
    %14 = vector.broadcast %13 : vector<16x1xf32> to vector<16x128xf32>
    %15 = arith.addf %14, %12 : vector<16x128xf32>
    %c3 = arith.constant 3 : index
    %c0_8 = arith.constant 0 : index
    %c0_9 = arith.constant 0 : index
    %16 = vector.load %arg2[%c3, %c0_8, %c0_9] : memref<7x16x128xf32, #tpu.memory_space<vmem>>, vector<1x16x128xf32>
    %17 = vector.shape_cast %16 : vector<1x16x128xf32> to vector<16x128xf32>
    %18 = vector.extract_strided_slice %0 {offsets = [0, 3], sizes = [16, 1], strides = [1, 1]} : vector<16x8xf32> to vector<16x1xf32>
    %19 = vector.broadcast %18 : vector<16x1xf32> to vector<16x128xf32>
    %20 = arith.addf %19, %17 : vector<16x128xf32>
    %c4 = arith.constant 4 : index
    %c0_10 = arith.constant 0 : index
    %c0_11 = arith.constant 0 : index
    %21 = vector.load %arg2[%c4, %c0_10, %c0_11] : memref<7x16x128xf32, #tpu.memory_space<vmem>>, vector<1x16x128xf32>
    %22 = vector.shape_cast %21 : vector<1x16x128xf32> to vector<16x128xf32>
    %23 = vector.extract_strided_slice %0 {offsets = [0, 4], sizes = [16, 1], strides = [1, 1]} : vector<16x8xf32> to vector<16x1xf32>
    %24 = vector.broadcast %23 : vector<16x1xf32> to vector<16x128xf32>
    %25 = arith.addf %24, %22 : vector<16x128xf32>
    %c5 = arith.constant 5 : index
    %c0_12 = arith.constant 0 : index
    %c0_13 = arith.constant 0 : index
    %26 = vector.load %arg2[%c5, %c0_12, %c0_13] : memref<7x16x128xf32, #tpu.memory_space<vmem>>, vector<1x16x128xf32>
    %27 = vector.shape_cast %26 : vector<1x16x128xf32> to vector<16x128xf32>
    %28 = vector.extract_strided_slice %0 {offsets = [0, 5], sizes = [16, 1], strides = [1, 1]} : vector<16x8xf32> to vector<16x1xf32>
    %29 = vector.broadcast %28 : vector<16x1xf32> to vector<16x128xf32>
    %30 = arith.addf %29, %27 : vector<16x128xf32>
    %c6 = arith.constant 6 : index
    %c0_14 = arith.constant 0 : index
    %c0_15 = arith.constant 0 : index
    %31 = vector.load %arg2[%c6, %c0_14, %c0_15] : memref<7x16x128xf32, #tpu.memory_space<vmem>>, vector<1x16x128xf32>
    %32 = vector.shape_cast %31 : vector<1x16x128xf32> to vector<16x128xf32>
    %33 = vector.extract_strided_slice %0 {offsets = [0, 6], sizes = [16, 1], strides = [1, 1]} : vector<16x8xf32> to vector<16x1xf32>
    %34 = vector.broadcast %33 : vector<16x1xf32> to vector<16x128xf32>
    %35 = arith.addf %34, %32 : vector<16x128xf32>
    %cst = arith.constant 0.000000e+00 : f32
    %36 = vector.broadcast %cst : f32 to vector<16x128xf32>
    %37 = arith.cmpf ogt, %10, %5 : vector<16x128xf32>
    %cst_16 = arith.constant 1.000000e+00 : f32
    %38 = vector.broadcast %cst_16 : f32 to vector<16x128xf32>
    %39 = arith.select %37, %38, %36 : vector<16x128xi1>, vector<16x128xf32>
    %40 = arith.maximumf %5, %10 : vector<16x128xf32>
    %41 = arith.cmpf ogt, %15, %40 : vector<16x128xf32>
    %cst_17 = arith.constant 2.000000e+00 : f32
    %42 = vector.broadcast %cst_17 : f32 to vector<16x128xf32>
    %43 = arith.select %41, %42, %39 : vector<16x128xi1>, vector<16x128xf32>
    %44 = arith.maximumf %40, %15 : vector<16x128xf32>
    %45 = arith.cmpf ogt, %20, %44 : vector<16x128xf32>
    %cst_18 = arith.constant 3.000000e+00 : f32
    %46 = vector.broadcast %cst_18 : f32 to vector<16x128xf32>
    %47 = arith.select %45, %46, %43 : vector<16x128xi1>, vector<16x128xf32>
    %48 = arith.maximumf %44, %20 : vector<16x128xf32>
    %49 = arith.cmpf ogt, %25, %48 : vector<16x128xf32>
    %cst_19 = arith.constant 4.000000e+00 : f32
    %50 = vector.broadcast %cst_19 : f32 to vector<16x128xf32>
    %51 = arith.select %49, %50, %47 : vector<16x128xi1>, vector<16x128xf32>
    %52 = arith.maximumf %48, %25 : vector<16x128xf32>
    %53 = arith.cmpf ogt, %30, %52 : vector<16x128xf32>
    %cst_20 = arith.constant 5.000000e+00 : f32
    %54 = vector.broadcast %cst_20 : f32 to vector<16x128xf32>
    %55 = arith.select %53, %54, %51 : vector<16x128xi1>, vector<16x128xf32>
    %56 = arith.maximumf %52, %30 : vector<16x128xf32>
    %57 = arith.cmpf ogt, %35, %56 : vector<16x128xf32>
    %cst_21 = arith.constant 6.000000e+00 : f32
    %58 = vector.broadcast %cst_21 : f32 to vector<16x128xf32>
    %59 = arith.select %57, %58, %55 : vector<16x128xi1>, vector<16x128xf32>
    %60 = arith.maximumf %56, %35 : vector<16x128xf32>
    %61 = arith.subf %5, %60 : vector<16x128xf32>
    %62 = math.exp %61 : vector<16x128xf32>
    %63 = arith.subf %10, %60 : vector<16x128xf32>
    %64 = math.exp %63 : vector<16x128xf32>
    %65 = arith.addf %62, %64 : vector<16x128xf32>
    %66 = arith.subf %15, %60 : vector<16x128xf32>
    %67 = math.exp %66 : vector<16x128xf32>
    %68 = arith.addf %65, %67 : vector<16x128xf32>
    %69 = arith.subf %20, %60 : vector<16x128xf32>
    %70 = math.exp %69 : vector<16x128xf32>
    %71 = arith.addf %68, %70 : vector<16x128xf32>
    %72 = arith.subf %25, %60 : vector<16x128xf32>
    %73 = math.exp %72 : vector<16x128xf32>
    %74 = arith.addf %71, %73 : vector<16x128xf32>
    %75 = arith.subf %30, %60 : vector<16x128xf32>
    %76 = math.exp %75 : vector<16x128xf32>
    %77 = arith.addf %74, %76 : vector<16x128xf32>
    %78 = arith.subf %35, %60 : vector<16x128xf32>
    %79 = math.exp %78 : vector<16x128xf32>
    %80 = arith.addf %77, %79 : vector<16x128xf32>
    %c0_22 = arith.constant 0 : index
    %c0_23 = arith.constant 0 : index
    %81 = vector.load %arg4[%c0_22, %c0_23] : memref<16x128xf32, #tpu.memory_space<vmem>>, vector<16x128xf32>
    tpu.vector_store %arg4[%c0_22, %c0_23], %59 {strides = array<i32>} : memref<16x128xf32, #tpu.memory_space<vmem>>, vector<16x128xf32>,
    %82 = vector.extract_strided_slice %80 {offsets = [0, 0], sizes = [8, 128], strides = [1, 1]} : vector<16x128xf32> to vector<8x128xf32>
    %83 = vector.extract_strided_slice %80 {offsets = [8, 0], sizes = [8, 128], strides = [1, 1]} : vector<16x128xf32> to vector<8x128xf32>
    %84 = arith.mulf %82, %83 : vector<8x128xf32>
    %85 = vector.extract_strided_slice %84 {offsets = [0, 0], sizes = [4, 128], strides = [1, 1]} : vector<8x128xf32> to vector<4x128xf32>
    %86 = vector.extract_strided_slice %84 {offsets = [4, 0], sizes = [4, 128], strides = [1, 1]} : vector<8x128xf32> to vector<4x128xf32>
    %87 = arith.mulf %85, %86 : vector<4x128xf32>
    %88 = vector.extract_strided_slice %87 {offsets = [0, 0], sizes = [2, 128], strides = [1, 1]} : vector<4x128xf32> to vector<2x128xf32>
    %89 = vector.extract_strided_slice %87 {offsets = [2, 0], sizes = [2, 128], strides = [1, 1]} : vector<4x128xf32> to vector<2x128xf32>
    %90 = arith.mulf %88, %89 : vector<2x128xf32>
    %91 = vector.extract_strided_slice %90 {offsets = [0, 0], sizes = [1, 128], strides = [1, 1]} : vector<2x128xf32> to vector<1x128xf32>
    %92 = vector.extract_strided_slice %90 {offsets = [1, 0], sizes = [1, 128], strides = [1, 1]} : vector<2x128xf32> to vector<1x128xf32>
    %93 = arith.mulf %91, %92 : vector<1x128xf32>
    %cst_24 = arith.constant 1.000000e+00 : f32
    %94 = vector.broadcast %cst_24 : f32 to vector<1x128xf32>
    %95 = arith.divf %94, %93 : vector<1x128xf32>
    %c0_25 = arith.constant 0 : index
    %c0_26 = arith.constant 0 : index
    %96 = vector.load %arg3[%c0_25, %c0_26] : memref<1x128xf32, #tpu.memory_space<vmem>>, vector<1x128xf32>
    tpu.vector_store %arg3[%c0_25, %c0_26], %95 {strides = array<i32>} : memref<1x128xf32, #tpu.memory_space<vmem>>, vector<1x128xf32>,
    return
  }
  func.func @transform_0(%arg0: i32) -> (i32, i32) {
    %c0_i32 = arith.constant 0 : i32
    %c0_i32_0 = arith.constant 0 : i32
    %c0_i32_1 = arith.constant 0 : i32
    return %c0_i32, %c0_i32_0 : i32, i32
  }
  func.func @transform_1(%arg0: i32) -> (i32, i32, i32) {
    %c0_i32 = arith.constant 0 : i32
    %c0_i32_0 = arith.constant 0 : i32
    %c0_i32_1 = arith.constant 0 : i32
    return %c0_i32, %c0_i32_0, %arg0 : i32, i32, i32
  }
  func.func @transform_2(%arg0: i32) -> (i32, i32) {
    %c0_i32 = arith.constant 0 : i32
    %c0_i32_0 = arith.constant 0 : i32
    return %c0_i32, %arg0 : i32, i32
  }
  func.func @transform_3(%arg0: i32) -> (i32, i32) {
    %c0_i32 = arith.constant 0 : i32
    %c0_i32_0 = arith.constant 0 : i32
    return %c0_i32, %arg0 : i32, i32
  }
}

</mosaic_0001>

<llo_original>
// kernel: tpu_custom_call.1
$region0: #{tpu_custom_call.1}
  #allocation0 [shape = 'u32[]', space=smem, size = 0x4, offset = 0x4, fixed_abs, tag = 'smem constant byte address 0x4 - core index']
  #allocation1 [shape = 'u32[72,128]{1,0:T(1,128)}', space=vmem, size = 0x9000, scoped, tag = 'internal scratch']
  %s0 = inlined_call_operand.vmem [shape: f32[16,8], index: 0, kind: input, shape index: {}]
  %s1 = inlined_call_operand.hbm [shape: f32[7,16,128], index: 1, kind: input, shape index: {}]
  %s2 = inlined_call_operand.hbm [shape: f32[1,128], index: 2, kind: output, shape index: {0}]
  %s3 = inlined_call_operand.hbm [shape: f32[16,128], index: 3, kind: output, shape index: {1}]
  %4 = xla_tuple %s2, %s3
  %s5 = sld [smem:[#allocation0]]
  $region30: #{tpu_custom_call.1} parent=0
    _
  %s7 = ssub.s32 1, %s5
  %s8 = scalar_select 0, %s7, %s5
  $region1: #{tpu_custom_call.1} parent=0
    #allocation2 [shape = 'u8[57344]{0}', space=vmem, size = 0xe000, scoped, tag = 'input window, operand 1, single buffered']
    #allocation3 [shape = 's32[1]{0}', space=sflag, size = 0x4, scoped, tag = 'scoped memory for tpu_custom_call.1']
    #allocation4 [shape = 's32[1]{0}', space=sflag, size = 0x4, scoped, tag = 'scoped memory for tpu_custom_call.1']
    #allocation5 [shape = 'u8[512]{0}', space=vmem, size = 0x400, scoped, tag = 'output window, operand 0, single buffered']
    #allocation6 [shape = 'u8[8192]{0}', space=vmem, size = 0x2000, scoped, tag = 'output window, operand 1, single buffered']
    #allocation7 [shape = 's32[1]{0}', space=sflag, size = 0x4, scoped, tag = 'scoped memory for tpu_custom_call.1']
    %9 = vsyncpa [#allocation3], 0
    %10 = vsyncpa [#allocation4], 0
    %11 = vsyncpa [#allocation7], 0
    // Predicated region
    $region2: #{tpu_custom_call.1} parent=1 // pred_check
      _
    $region3: #{tpu_custom_call.1} parent=1 // pred_check_branch
      %13 = sbr.rel (0) target = $region5
    $region4: #{tpu_custom_call.1} parent=1 // pred_region
      _
    $region5: #{tpu_custom_call.1} parent=1 // pred_fallthru
      _
    // Predicated region
    $region6: #{tpu_custom_call.1} parent=1 // pred_check
      _
    $region7: #{tpu_custom_call.1} parent=1 // pred_check_branch
      %15 = sbr.rel (0) target = $region9
    $region8: #{tpu_custom_call.1} parent=1 // pred_region
      %17 = vsyncadd [#allocation3], 0
      %s18 = sshll.u32 %s1, 4
      %s19 = int_to_ptr.hbm [resolvable:$true] %s18
      %s20 = sshll.u32 [#allocation2], 4
      %s21 = int_to_ptr.vmem [resolvable:$true] %s20
      %26 = dma.hbm_to_vmem [thread:$0]  %s19, 1792, %s21, [#allocation3], 128, 128, 8
    $region9: #{tpu_custom_call.1} parent=1 // pred_fallthru
      _
    // Predicated region
    $region10: #{tpu_custom_call.1} parent=1 // pred_check
      _
    $region11: #{tpu_custom_call.1} parent=1 // pred_check_branch
      %28 = sbr.rel (0) target = $region13
    $region12: #{tpu_custom_call.1} parent=1 // pred_region
      %30 = dma.done [#allocation3], 1792
    $region13: #{tpu_custom_call.1} parent=1 // pred_fallthru
      _
    %v31 = vld [vmem:[%s0] sm:$0xff]
    %v32 = vld [vmem:[%s0 + $0x8] sm:$0xff]
    %v33 = vld [vmem:[#allocation2] sm:$0xff]
    %v34 = vld [vmem:[#allocation2 + $0x8] sm:$0xff]
    %36 = vset.pattern.permute.xlu0 0
    %37 = vperm.xlu0 %36, %v31
    %v38 = vpop.permute.xlu0 %37
    %41 = vset.pattern.permute.xlu0 0
    %42 = vperm.xlu0 %41, %v32
    %v43 = vpop.permute.xlu0 %42
    %v45 = vadd.f32 %v38, %v33
    %v46 = vadd.f32 %v43, %v34
    %s47 = scalar_lea.vmem [#allocation2], 16
    %v48 = vld [vmem:[%s47] sm:$0xff]
    %v49 = vld [vmem:[%s47 + $0x8] sm:$0xff]
    %50 = vset.pattern.permute.xlu0 1
    %51 = vperm.xlu0 %50, %v31
    %v52 = vpop.permute.xlu0 %51
    %54 = vset.pattern.permute.xlu0 1
    %55 = vperm.xlu0 %54, %v32
    %v56 = vpop.permute.xlu0 %55
    %v58 = vadd.f32 %v52, %v48
    %v59 = vadd.f32 %v56, %v49
    %s60 = scalar_lea.vmem [#allocation2], 32
    %v61 = vld [vmem:[%s60] sm:$0xff]
    %v62 = vld [vmem:[%s60 + $0x8] sm:$0xff]
    %63 = vset.pattern.permute.xlu0 2
    %64 = vperm.xlu0 %63, %v31
    %v65 = vpop.permute.xlu0 %64
    %67 = vset.pattern.permute.xlu0 2
    %68 = vperm.xlu0 %67, %v32
    %v69 = vpop.permute.xlu0 %68
    %v71 = vadd.f32 %v65, %v61
    %v72 = vadd.f32 %v69, %v62
    %s73 = scalar_lea.vmem [#allocation2], 48
    %v74 = vld [vmem:[%s73] sm:$0xff]
    %v75 = vld [vmem:[%s73 + $0x8] sm:$0xff]
    %76 = vset.pattern.permute.xlu0 3
    %77 = vperm.xlu0 %76, %v31
    %v78 = vpop.permute.xlu0 %77
    %80 = vset.pattern.permute.xlu0 3
    %81 = vperm.xlu0 %80, %v32
    %v82 = vpop.permute.xlu0 %81
    %v84 = vadd.f32 %v78, %v74
    %v85 = vadd.f32 %v82, %v75
    %s86 = scalar_lea.vmem [#allocation2], 64
    %v87 = vld [vmem:[%s86] sm:$0xff]
    %v88 = vld [vmem:[%s86 + $0x8] sm:$0xff]
    %89 = vset.pattern.permute.xlu0 4
    %90 = vperm.xlu0 %89, %v31
    %v91 = vpop.permute.xlu0 %90
    %93 = vset.pattern.permute.xlu0 4
    %94 = vperm.xlu0 %93, %v32
    %v95 = vpop.permute.xlu0 %94
    %v97 = vadd.f32 %v91, %v87
    %v98 = vadd.f32 %v95, %v88
    %s99 = scalar_lea.vmem [#allocation2], 80
    %v100 = vld [vmem:[%s99] sm:$0xff]
    %v101 = vld [vmem:[%s99 + $0x8] sm:$0xff]
    %102 = vset.pattern.permute.xlu0 5
    %103 = vperm.xlu0 %102, %v31
    %v104 = vpop.permute.xlu0 %103
    %106 = vset.pattern.permute.xlu0 5
    %107 = vperm.xlu0 %106, %v32
    %v108 = vpop.permute.xlu0 %107
    %v110 = vadd.f32 %v104, %v100
    %v111 = vadd.f32 %v108, %v101
    %s112 = scalar_lea.vmem [#allocation2], 96
    %v113 = vld [vmem:[%s112] sm:$0xff]
    %v114 = vld [vmem:[%s112 + $0x8] sm:$0xff]
    %115 = vset.pattern.permute.xlu0 6
    %116 = vperm.xlu0 %115, %v31
    %v117 = vpop.permute.xlu0 %116
    %119 = vset.pattern.permute.xlu0 6
    %120 = vperm.xlu0 %119, %v32
    %v121 = vpop.permute.xlu0 %120
    %v123 = vadd.f32 %v117, %v113
    %v124 = vadd.f32 %v121, %v114
    %vm125 = vcmp.gt.f32.partialorder %v58, %v45
    %vm126 = vcmp.gt.f32.partialorder %v59, %v46
    %v127 = vsel %vm125, 1.0, 0.0
    %v128 = vsel %vm126, 1.0, 0.0
    %v129 = vmax.f32 %v45, %v58
    %v130 = vmax.f32 %v46, %v59
    %vm131 = vcmp.gt.f32.partialorder %v71, %v129
    %vm132 = vcmp.gt.f32.partialorder %v72, %v130
    %v133 = vsel %vm131, 2.0, %v127
    %v134 = vsel %vm132, 2.0, %v128
    %v135 = vmax.f32 %v129, %v71
    %v136 = vmax.f32 %v130, %v72
    %vm137 = vcmp.gt.f32.partialorder %v84, %v135
    %vm138 = vcmp.gt.f32.partialorder %v85, %v136
    %v139 = vsel %vm137, 3.0, %v133
    %v140 = vsel %vm138, 3.0, %v134
    %v141 = vmax.f32 %v135, %v84
    %v142 = vmax.f32 %v136, %v85
    %vm143 = vcmp.gt.f32.partialorder %v97, %v141
    %vm144 = vcmp.gt.f32.partialorder %v98, %v142
    %v145 = vsel %vm143, 4.0, %v139
    %v146 = vsel %vm144, 4.0, %v140
    %v147 = vmax.f32 %v141, %v97
    %v148 = vmax.f32 %v142, %v98
    %vm149 = vcmp.gt.f32.partialorder %v110, %v147
    %vm150 = vcmp.gt.f32.partialorder %v111, %v148
    %v151 = vsel %vm149, 5.0, %v145
    %v152 = vsel %vm150, 5.0, %v146
    %v153 = vmax.f32 %v147, %v110
    %v154 = vmax.f32 %v148, %v111
    %vm155 = vcmp.gt.f32.partialorder %v123, %v153
    %vm156 = vcmp.gt.f32.partialorder %v124, %v154
    %v157 = vsel %vm155, 6.0, %v151
    %v158 = vsel %vm156, 6.0, %v152
    %v159 = vmax.f32 %v153, %v123
    %v160 = vmax.f32 %v154, %v124
    %v161 = vsub.f32 %v45, %v159
    %v162 = vsub.f32 %v46, %v160
    %v163 = vmul.f32 %v161, 1.442695
    %v164 = vpow.pop %v163
    %v165 = vmul.f32 %v162, 1.442695
    %v166 = vpow.pop %v165
    %v167 = vsub.f32 %v58, %v159
    %v168 = vsub.f32 %v59, %v160
    %v169 = vmul.f32 %v167, 1.442695
    %v170 = vpow.pop %v169
    %v171 = vmul.f32 %v168, 1.442695
    %v172 = vpow.pop %v171
    %v173 = vadd.f32 %v164, %v170
    %v174 = vadd.f32 %v166, %v172
    %v175 = vsub.f32 %v71, %v159
    %v176 = vsub.f32 %v72, %v160
    %v177 = vmul.f32 %v175, 1.442695
    %v178 = vpow.pop %v177
    %v179 = vmul.f32 %v176, 1.442695
    %v180 = vpow.pop %v179
    %v181 = vadd.f32 %v173, %v178
    %v182 = vadd.f32 %v174, %v180
    %v183 = vsub.f32 %v84, %v159
    %v184 = vsub.f32 %v85, %v160
    %v185 = vmul.f32 %v183, 1.442695
    %v186 = vpow.pop %v185
    %v187 = vmul.f32 %v184, 1.442695
    %v188 = vpow.pop %v187
    %v189 = vadd.f32 %v181, %v186
    %v190 = vadd.f32 %v182, %v188
    %v191 = vsub.f32 %v97, %v159
    %v192 = vsub.f32 %v98, %v160
    %v193 = vmul.f32 %v191, 1.442695
    %v194 = vpow.pop %v193
    %v195 = vmul.f32 %v192, 1.442695
    %v196 = vpow.pop %v195
    %v197 = vadd.f32 %v189, %v194
    %v198 = vadd.f32 %v190, %v196
    %v199 = vsub.f32 %v110, %v159
    %v200 = vsub.f32 %v111, %v160
    %v201 = vmul.f32 %v199, 1.442695
    %v202 = vpow.pop %v201
    %v203 = vmul.f32 %v200, 1.442695
    %v204 = vpow.pop %v203
    %v205 = vadd.f32 %v197, %v202
    %v206 = vadd.f32 %v198, %v204
    %v207 = vsub.f32 %v123, %v159
    %v208 = vsub.f32 %v124, %v160
    %v209 = vmul.f32 %v207, 1.442695
    %v210 = vpow.pop %v209
    %v211 = vmul.f32 %v208, 1.442695
    %v212 = vpow.pop %v211
    %v213 = vadd.f32 %v205, %v210
    %v214 = vadd.f32 %v206, %v212
    %215 = vst [vmem:[#allocation6] sm:$0xff] %v157
    %216 = vst [vmem:[#allocation6 + $0x8] sm:$0xff] %v158
    %v217 = vmul.f32 %v213, %v214
    %v219 = vrot.slane %v217, 4
    %v221 = vmul.f32 %v217, %v219
    %v223 = vrot.slane %v221, 2
    %v225 = vmul.f32 %v221, %v223
    %v227 = vrot.slane %v225, 1
    %v229 = vmul.f32 %v225, %v227
    %v230 = vrcp.pop %v229
    %v231 = vmul.f32 %v229, %v230
    %v232 = vsub.f32 1.0, %v231
    %v233 = vmul.f32 %v230, %v232
    %v234 = vadd.f32 %v230, %v233
    %vm235 = vweird.f32 %v229
    %vm236 = vweird.f32 %v230
    %vm237 = vmor %vm235, %vm236
    %v238 = vsel %vm237, %v230, %v234
    %v239 = vand.u32 2147483647, %v229
    %vm240 = vcmp.eq.f32.partialorder %v239, 8.507059e+37
    %v241 = vand.u32 %v229, 2147483648
    %v242 = vor.u32 1.1754944e-38, %v241
    %v243 = vsel %vm240, %v242, %v238
    %v244 = vmul.f32 1.0, %v243
    %245 = vst [vmem:[#allocation5] sm:$0x1] %v244
    // Predicated region
    $region14: #{tpu_custom_call.1} parent=1 // pred_check
      _
    $region15: #{tpu_custom_call.1} parent=1 // pred_check_branch
      %247 = sbr.rel (0) target = $region17
    $region16: #{tpu_custom_call.1} parent=1 // pred_region
      %249 = vsyncadd [#allocation4], 0
      %s251 = sshll.u32 [#allocation5], 4
      %s252 = int_to_ptr.vmem [resolvable:$true] %s251
      %s253 = sshll.u32 %s2, 4
      %s254 = int_to_ptr.hbm [resolvable:$true] %s253
      %256 = dma.vmem_to_hbm [thread:$0]  %s252, 16, %s254, [#allocation4]
    $region17: #{tpu_custom_call.1} parent=1 // pred_fallthru
      _
    // Predicated region
    $region18: #{tpu_custom_call.1} parent=1 // pred_check
      _
    $region19: #{tpu_custom_call.1} parent=1 // pred_check_branch
      %258 = sbr.rel (0) target = $region21
    $region20: #{tpu_custom_call.1} parent=1 // pred_region
      %260 = vsyncadd [#allocation7], 0
      %s261 = sshll.u32 [#allocation6], 4
      %s262 = int_to_ptr.vmem [resolvable:$true] %s261
      %s263 = sshll.u32 %s3, 4
      %s264 = int_to_ptr.hbm [resolvable:$true] %s263
      %269 = dma.vmem_to_hbm [thread:$0]  %s262, 256, %s264, [#allocation7], 128, 128, 8
    $region21: #{tpu_custom_call.1} parent=1 // pred_fallthru
      _
    // Predicated region
    $region22: #{tpu_custom_call.1} parent=1 // pred_check
      _
    $region23: #{tpu_custom_call.1} parent=1 // pred_check_branch
      %271 = sbr.rel (0) target = $region25
    $region24: #{tpu_custom_call.1} parent=1 // pred_region
      %273 = dma.done [#allocation4], 16
    $region25: #{tpu_custom_call.1} parent=1 // pred_fallthru
      _
    // Predicated region
    $region26: #{tpu_custom_call.1} parent=1 // pred_check
      _
    $region27: #{tpu_custom_call.1} parent=1 // pred_check_branch
      %275 = sbr.rel (0) target = $region29
    $region28: #{tpu_custom_call.1} parent=1 // pred_region
      %277 = dma.done [#allocation7], 256
    $region29: #{tpu_custom_call.1} parent=1 // pred_fallthru
      _
    %278 = vsyncpa [#allocation3], 1
    %279 = vsyncpa [#allocation4], 1
    %280 = vsyncpa [#allocation7], 1

</llo_original>
